<compile_context>
chip_gen: v5e
topology: v5e:2x2
jax: 0.10.0
libtpu: 0.0.40
codegen_flags: <defaults>
</compile_context>

<pallas_src>
import functools
import math

import jax
import jax.numpy as jnp
import numpy as np
from jax.experimental import pallas as pl
from jax.experimental.pallas import tpu as pltpu

_LANES = 128
_MAX_TILE_ROWS = 6144                  # 3 MiB per f32 input tile
_VMEM_LIMIT_BYTES = 40 * 1024 * 1024   # safe on v5e/v6e (128 MiB) and v7x (64 MiB)


def _pose_loss_kernel(pred_ref, targ_ref, out_ref, acc_ref, *,
                      tile_rows, acc_rows, valid_rows, tiles_per_chunk):
    """Accumulate unscaled squared diffs into (row % acc_rows, lane) buckets."""
    p = pl.program_id(0)
    t = pl.program_id(1)

    @pl.when(t == 0)
    def _init():
        acc_ref[...] = jnp.zeros_like(acc_ref)

    # Rows of this tile that lie inside the real array.  The grid may
    # over-cover it; Pallas returns garbage for out-of-bounds rows, which we
    # mask away here (select, not multiply, so NaN/Inf garbage is harmless).
    start = (p * tiles_per_chunk + t) * tile_rows
    valid = valid_rows - start                      # may be <= 0 or > tile_rows

    diff = pred_ref[...].astype(jnp.float32) - targ_ref[...].astype(jnp.float32)
    row_ids = jax.lax.broadcasted_iota(jnp.int32, (tile_rows, _LANES), 0)
    diff = jnp.where(row_ids < valid, diff, 0.0)
    sq = diff * diff
    # Free reshape (acc_rows is a multiple of the sublane packing); the axis-0
    # reduction is plain elementwise vreg adds (VPU only, no cross-lane work).
    acc_ref[...] += jnp.sum(sq.reshape(tile_rows // acc_rows, acc_rows, _LANES),
                            axis=0)

    @pl.when(t == pl.num_programs(1) - 1)
    def _finalize():
        out_ref[...] = acc_ref[...].reshape(out_ref.shape)


def custom_loss(predictions, targets, position_weight=1.0, rotation_weight=0.5,
                max_tile_rows=_MAX_TILE_ROWS):
    """Weighted position+rotation MSE loss (matches CustomLoss.forward)."""
    assert predictions.shape == targets.shape
    B, D = predictions.shape
    assert D > 3, "need position (3) + at least one rotation component"
    total = B * D

    # The per-(row, lane) feature pattern of the flat (rows, 128) view repeats
    # every `period` rows; accumulator rows must also be a multiple of the
    # sublane packing of the input dtype (8 for f32, 16 for bf16, ...).
    period = D // math.gcd(D, _LANES)

    def _pack(dt):
        return 8 * max(1, 4 // jnp.dtype(dt).itemsize)

    row_pack = max(_pack(predictions.dtype), _pack(targets.dtype))
    acc_rows = math.lcm(period, row_pack)

    rows = -(-total // _LANES)                      # ceil(total / 128)
    pred_flat = predictions.reshape(-1)
    targ_flat = targets.reshape(-1)

    if total % _LANES != 0 or rows < acc_rows:
        # Fallback: minimal zero-pad so the (rows, 128) view exists and is at
        # least one accumulator slab tall.  This copies the inputs once; the
        # aligned large-batch case below is copy-free.
        # TODO(synk): a fully copy-free path for unaligned B*D would need
        # manual DMA from the flat HBM ref; not worth it for this loss.
        rows_arr = max(rows, acc_rows)
        pad = rows_arr * _LANES - total
        pred_flat = jnp.pad(pred_flat, (0, pad))
        targ_flat = jnp.pad(targ_flat, (0, pad))
    else:
        rows_arr = rows                              # free reshape, zero copy

    pred2d = pred_flat.reshape(rows_arr, _LANES)
    targ2d = targ_flat.reshape(rows_arr, _LANES)

    # Tile rows: a multiple of acc_rows (so every tile start is aligned to the
    # feature period and the in-kernel reshape is layout-preserving), capped
    # per-tile VMEM budget, never larger than the array itself.
    cap = max(acc_rows, (max_tile_rows // acc_rows) * acc_rows)
    tile_rows = min((rows_arr // acc_rows) * acc_rows, cap)
    num_tiles = -(-rows_arr // tile_rows)
    num_parallel = 2 if num_tiles >= 4 else 1        # v7x megacore split
    tiles_per_chunk = -(-num_tiles // num_parallel)
    last_tile = num_tiles - 1

    def data_map(p, t, T=tiles_per_chunk, last=last_tile):
        # Clamp so no DMA starts fully outside the array; the clamped tile's
        # contribution is masked away in the kernel by the row-validity test.
        return (jnp.minimum(p * T + t, last), 0)

    kernel = functools.partial(
        _pose_loss_kernel, tile_rows=tile_rows, acc_rows=acc_rows,
        valid_rows=rows_arr, tiles_per_chunk=tiles_per_chunk)

    partials = pl.pallas_call(
        kernel,
        out_shape=jax.ShapeDtypeStruct((num_parallel, acc_rows, _LANES),
                                       jnp.float32),
        grid=(num_parallel, tiles_per_chunk),
        in_specs=[
            pl.BlockSpec((tile_rows, _LANES), data_map),
            pl.BlockSpec((tile_rows, _LANES), data_map),
        ],
        out_specs=pl.BlockSpec((1, acc_rows, _LANES), lambda p, t: (p, 0, 0)),
        scratch_shapes=[pltpu.VMEM((acc_rows, _LANES), jnp.float32)],
        compiler_params=pltpu.CompilerParams(
            dimension_semantics=("parallel", "arbitrary"),
            vmem_limit_bytes=_VMEM_LIMIT_BYTES),
    )(pred2d, targ2d)

    # Fold the weights and the position / rotation mean divisors into one tiny
    # (acc_rows, 128) scale applied to the bucketed partial sums.  Bucket
    # (r, lane) holds only elements whose feature index is (r*128 + lane) % D.
    feat = np.arange(acc_rows * _LANES, dtype=np.int32).reshape(acc_rows, _LANES) % D
    pos_scale = jnp.asarray(position_weight, jnp.float32) / jnp.float32(B * 3)
    rot_scale = jnp.asarray(rotation_weight, jnp.float32) / jnp.float32(B * (D - 3))
    scale = jnp.where(jnp.asarray(feat) < 3, pos_scale, rot_scale)
    return jnp.sum(jnp.sum(partials, axis=0) * scale)


def _reference_loss(predictions, targets, position_weight=1.0, rotation_weight=0.5):
    pred_pos, pred_rot = predictions[:, :3], predictions[:, 3:]
    targ_pos, targ_rot = targets[:, :3], targets[:, 3:]
    pos_loss = jnp.mean((pred_pos - targ_pos) ** 2)
    rot_loss = jnp.mean((pred_rot - targ_rot) ** 2)
    return position_weight * pos_loss + rotation_weight * rot_loss


if __name__ == "__main__":
    key = jax.random.PRNGKey(0)
    k_pred, k_targ = jax.random.split(key)

    # Primary smoke test: batch of 8 poses, 3 position + 3 rotation components.
    B, D = 8, 6
    predictions = jax.random.normal(k_pred, (B, D), dtype=jnp.float32)
    targets = jax.random.normal(k_targ, (B, D), dtype=jnp.float32)

    loss_fn = jax.jit(custom_loss)
    loss = jax.block_until_ready(loss_fn(predictions, targets))
    ref = _reference_loss(predictions, targets, 1.0, 0.5)
    assert jnp.allclose(loss, ref, rtol=1e-5, atol=1e-6), (loss, ref)

    # Unaligned B*D -> pad fallback + multi-tile + partial-last-tile row mask.
    p2 = jax.random.normal(k_pred, (1000, 6), dtype=jnp.float32)
    t2 = jax.random.normal(k_targ, (1000, 6), dtype=jnp.float32)
    out2 = jax.block_until_ready(custom_loss(p2, t2, 1.0, 0.5, max_tile_rows=24))
    assert jnp.allclose(out2, _reference_loss(p2, t2, 1.0, 0.5),
                        rtol=1e-5, atol=1e-6), out2

    # 128-aligned B*D -> zero-copy reshape + 4 tiles -> megacore (2x2) grid.
    p3 = jax.random.normal(k_pred, (2048, 6), dtype=jnp.float32)
    t3 = jax.random.normal(k_targ, (2048, 6), dtype=jnp.float32)
    out3 = jax.block_until_ready(custom_loss(p3, t3, 0.7, 1.3, max_tile_rows=24))
    assert jnp.allclose(out3, _reference_loss(p3, t3, 0.7, 1.3),
                        rtol=1e-5, atol=1e-6), out3

    print("KERNEL_OK")
</pallas_src>

<mosaic_0001>
module attributes {stable_mosaic.version = 11 : i64} {
  func.func @_pose_loss_kernel(%arg0: i32, %arg1: i32, %arg2: memref<24x128xf32, #tpu.memory_space<vmem>>, %arg3: memref<24x128xf32, #tpu.memory_space<vmem>>, %arg4: memref<1x24x128xf32, #tpu.memory_space<vmem>>, %arg5: memref<24x128xf32, #tpu.memory_space<vmem>>) attributes {dimension_semantics = [#tpu.dimension_semantics<parallel>, #tpu.dimension_semantics<arbitrary>], iteration_bounds = array<i64: 1, 1>, scalar_prefetch = 0 : i64, scratch_operands = 1 : i64, tpu.core_type = #tpu.core_type<tc>, window_params = [{transform_indices = @transform_0, window_bounds = array<i64: 24, 128>}, {transform_indices = @transform_1, window_bounds = array<i64: 24, 128>}, {transform_indices = @transform_2, window_bounds = array<i64: 1, 24, 128>}]} {
    %c0_i32 = arith.constant 0 : i32
    %0 = arith.cmpi eq, %arg1, %c0_i32 : i32
    %1 = arith.extui %0 : i1 to i32
    %c0_i32_0 = arith.constant 0 : i32
    %2 = arith.cmpi ne, %1, %c0_i32_0 : i32
    scf.if %2 {
      %cst_12 = arith.constant 0.000000e+00 : f32
      %24 = vector.broadcast %cst_12 : f32 to vector<24x128xf32>
      %c0_13 = arith.constant 0 : index
      %c0_14 = arith.constant 0 : index
      %25 = vector.load %arg5[%c0_13, %c0_14] : memref<24x128xf32, #tpu.memory_space<vmem>>, vector<24x128xf32>
      tpu.vector_store %arg5[%c0_13, %c0_14], %24 {strides = array<i32>} : memref<24x128xf32, #tpu.memory_space<vmem>>, vector<24x128xf32>,
    } else {
    }
    %c1_i32 = arith.constant 1 : i32
    %3 = arith.muli %arg0, %c1_i32 : i32
    %4 = arith.addi %3, %arg1 : i32
    %c24_i32 = arith.constant 24 : i32
    %5 = arith.muli %4, %c24_i32 : i32
    %c24_i32_1 = arith.constant 24 : i32
    %6 = arith.subi %c24_i32_1, %5 : i32
    %c0 = arith.constant 0 : index
    %c0_2 = arith.constant 0 : index
    %7 = vector.load %arg2[%c0, %c0_2] : memref<24x128xf32, #tpu.memory_space<vmem>>, vector<24x128xf32>
    %c0_3 = arith.constant 0 : index
    %c0_4 = arith.constant 0 : index
    %8 = vector.load %arg3[%c0_3, %c0_4] : memref<24x128xf32, #tpu.memory_space<vmem>>, vector<24x128xf32>
    %9 = arith.subf %7, %8 : vector<24x128xf32>
    %10 = tpu.iota {dimensions = array<i32: 0>} : vector<24x128xi32>
    %11 = vector.broadcast %6 : i32 to vector<24x128xi32>
    %12 = arith.cmpi slt, %10, %11 : vector<24x128xi32>
    %cst = arith.constant 0.000000e+00 : f32
    %13 = vector.broadcast %cst : f32 to vector<24x128xf32>
    %14 = arith.select %12, %9, %13 : vector<24x128xi1>, vector<24x128xf32>
    %15 = arith.mulf %14, %14 : vector<24x128xf32>
    %c0_5 = arith.constant 0 : index
    %c0_6 = arith.constant 0 : index
    %16 = vector.load %arg5[%c0_5, %c0_6] : memref<24x128xf32, #tpu.memory_space<vmem>>, vector<24x128xf32>
    %17 = vector.shape_cast %15 : vector<24x128xf32> to vector<1x24x128xf32>
    %cst_7 = arith.constant dense<0.000000e+00> : vector<24x128xf32>
    %18 = vector.multi_reduction <add>, %17, %cst_7 [0] : vector<1x24x128xf32> to vector<24x128xf32>
    %19 = arith.addf %16, %18 : vector<24x128xf32>
    %c0_8 = arith.constant 0 : index
    %c0_9 = arith.constant 0 : index
    %20 = vector.load %arg5[%c0_8, %c0_9] : memref<24x128xf32, #tpu.memory_space<vmem>>, vector<24x128xf32>
    tpu.vector_store %arg5[%c0_8, %c0_9], %19 {strides = array<i32>} : memref<24x128xf32, #tpu.memory_space<vmem>>, vector<24x128xf32>,
    %c0_i32_10 = arith.constant 0 : i32
    %21 = arith.cmpi eq, %arg1, %c0_i32_10 : i32
    %22 = arith.extui %21 : i1 to i32
    %c0_i32_11 = arith.constant 0 : i32
    %23 = arith.cmpi ne, %22, %c0_i32_11 : i32
    scf.if %23 {
      %c0_12 = arith.constant 0 : index
      %c0_13 = arith.constant 0 : index
      %24 = vector.load %arg5[%c0_12, %c0_13] : memref<24x128xf32, #tpu.memory_space<vmem>>, vector<24x128xf32>
      %25 = vector.shape_cast %24 : vector<24x128xf32> to vector<1x24x128xf32>
      %c0_14 = arith.constant 0 : index
      %c0_15 = arith.constant 0 : index
      %c0_16 = arith.constant 0 : index
      %26 = vector.load %arg4[%c0_14, %c0_15, %c0_16] : memref<1x24x128xf32, #tpu.memory_space<vmem>>, vector<1x24x128xf32>
      tpu.vector_store %arg4[%c0_14, %c0_15, %c0_16], %25 {strides = array<i32>} : memref<1x24x128xf32, #tpu.memory_space<vmem>>, vector<1x24x128xf32>,
    } else {
    }
    return
  }
  func.func @transform_0(%arg0: i32, %arg1: i32) -> (i32, i32) {
    %c1_i32 = arith.constant 1 : i32
    %0 = arith.muli %arg0, %c1_i32 : i32
    %1 = arith.addi %0, %arg1 : i32
    %c0_i32 = arith.constant 0 : i32
    %2 = arith.minsi %1, %c0_i32 : i32
    %c0_i32_0 = arith.constant 0 : i32
    %c0_i32_1 = arith.constant 0 : i32
    return %2, %c0_i32_0 : i32, i32
  }
  func.func @transform_1(%arg0: i32, %arg1: i32) -> (i32, i32) {
    %c1_i32 = arith.constant 1 : i32
    %0 = arith.muli %arg0, %c1_i32 : i32
    %1 = arith.addi %0, %arg1 : i32
    %c0_i32 = arith.constant 0 : i32
    %2 = arith.minsi %1, %c0_i32 : i32
    %c0_i32_0 = arith.constant 0 : i32
    %c0_i32_1 = arith.constant 0 : i32
    return %2, %c0_i32_0 : i32, i32
  }
  func.func @transform_2(%arg0: i32, %arg1: i32) -> (i32, i32, i32) {
    %c0_i32 = arith.constant 0 : i32
    %c0_i32_0 = arith.constant 0 : i32
    %c0_i32_1 = arith.constant 0 : i32
    return %arg0, %c0_i32, %c0_i32_0 : i32, i32, i32
  }
}

</mosaic_0001>

<llo_original>
// kernel: custom_loss.1
$region0: #{custom_loss.1}
  #allocation0 [shape = 'u32[]', space=smem, size = 0x4, offset = 0x4, fixed_abs, tag = 'smem constant byte address 0x4 - core index']
  #allocation1 [shape = 'u32[72,128]{1,0:T(1,128)}', space=vmem, size = 0x9000, scoped, tag = 'internal scratch']
  #allocation2 [shape = 'f32[24,128]{1,0:T(8,128)}', space=vmem, size = 0x3000, scoped, tag = 'scratch operand']
  %s0 = inlined_call_operand.vmem [shape: f32[24,128], index: 0, kind: input, shape index: {}]
  %s1 = inlined_call_operand.vmem [shape: f32[24,128], index: 1, kind: input, shape index: {}]
  %s2 = inlined_call_operand.vmem [shape: f32[1,24,128], index: 2, kind: output, shape index: {}]
  %s3 = sld [smem:[#allocation0]]
  $region26: #{custom_loss.1} parent=0
    _
  %s5 = ssub.s32 1, %s3
  %s6 = scalar_select 0, %s5, %s3
  // Predicated region
  $region2: #{custom_loss.1} parent=0 // pred_check
    _
  $region3: #{custom_loss.1} parent=0 // pred_check_branch
    %8 = sbr.rel (0) target = $region5
  $region4: #{custom_loss.1} parent=0 // pred_region
    %s9 = sadd.s32 0, 0
    %p10 = scmp.lt.s32.totalorder %s9, 0
    %s11 = scalar_select %p10, %s9, 0
    %s12 = smul.u32 3, %s11
    %p13 = scmp.lt.s32.totalorder %s12, 2
    %s14 = scalar_select %p13, %s12, 2
    %s15 = smul.addr %s14, 8
    %s16 = scalar_lea.vmem %s0, %s15
    %s17 = sadd.s32 0, 0
    %p18 = scmp.lt.s32.totalorder %s17, 0
    %s19 = scalar_select %p18, %s17, 0
    %s20 = smul.u32 3, %s19
  $region5: #{custom_loss.1} parent=0 // pred_fallthru
    _
  // Predicated region
  $region6: #{custom_loss.1} parent=0 // pred_check
    _
  $region7: #{custom_loss.1} parent=0 // pred_check_branch
    %22 = sbr.rel (0) target = $region9
  $region8: #{custom_loss.1} parent=0 // pred_region
    %s23 = sadd.s32 0, 0
    %p24 = scmp.lt.s32.totalorder %s23, 0
    %s25 = scalar_select %p24, %s23, 0
    %s26 = smul.u32 3, %s25
    %p27 = scmp.lt.s32.totalorder %s26, 2
    %s28 = scalar_select %p27, %s26, 2
    %s29 = smul.addr %s28, 8
    %s30 = scalar_lea.vmem %s1, %s29
    %s31 = sadd.s32 0, 0
    %p32 = scmp.lt.s32.totalorder %s31, 0
    %s33 = scalar_select %p32, %s31, 0
    %s34 = smul.u32 3, %s33
  $region9: #{custom_loss.1} parent=0 // pred_fallthru
    _
  %s35 = sadd.s32 0, 0
  %p36 = scmp.lt.s32.totalorder %s35, 0
  %s37 = scalar_select %p36, %s35, 0
  %s38 = smul.u32 3, %s37
  %p39 = scmp.lt.s32.totalorder %s38, 2
  %s40 = scalar_select %p39, %s38, 2
  %s41 = smul.addr %s40, 8
  %s42 = scalar_lea.vmem %s0, %s41
  %s43 = sadd.s32 0, 0
  %p44 = scmp.lt.s32.totalorder %s43, 0
  %s45 = scalar_select %p44, %s43, 0
  %s46 = smul.u32 3, %s45
  %p47 = scmp.lt.s32.totalorder %s46, 2
  %s48 = scalar_select %p47, %s46, 2
  %s49 = smul.addr %s48, 8
  %s50 = scalar_lea.vmem %s1, %s49
  %s51 = sadd.s32 0, 0
  %p52 = scmp.lt.s32.totalorder %s51, 0
  %s53 = scalar_select %p52, %s51, 0
  %s54 = smul.u32 3, %s53
  %p55 = scmp.lt.s32.totalorder %s54, 2
  %s56 = scalar_select %p55, %s54, 2
  %s57 = smul.addr %s56, 8
  %s58 = scalar_lea.vmem %s0, %s57
  %s59 = sadd.s32 0, 0
  %p60 = scmp.lt.s32.totalorder %s59, 0
  %s61 = scalar_select %p60, %s59, 0
  %s62 = smul.u32 3, %s61
  %s63 = sadd.s32 0, 0
  %p64 = scmp.lt.s32.totalorder %s63, 0
  %s65 = scalar_select %p64, %s63, 0
  %s66 = smul.u32 3, %s65
  %p67 = scmp.lt.s32.totalorder %s66, 2
  %s68 = scalar_select %p67, %s66, 2
  %s69 = smul.addr %s68, 8
  %s70 = scalar_lea.vmem %s1, %s69
  %s71 = sadd.s32 0, 0
  %p72 = scmp.lt.s32.totalorder %s71, 0
  %s73 = scalar_select %p72, %s71, 0
  %s74 = smul.u32 3, %s73
  %p75 = scmp.eq.s32.totalorder 0, 0
  // Predicated region
  $region10: #{custom_loss.1} parent=0 // pred_check
    %p76 = pneg %p75
  $region11: #{custom_loss.1} parent=0 // pred_check_branch
    %78 = sbr.rel (%p76) target = $region13
  $region12: #{custom_loss.1} parent=0 // pred_region
    %79 = vst [vmem:[#allocation2] sm:$0xff] 0.0
    %80 = vst [vmem:[#allocation2 + $0x8] sm:$0xff] 0.0
    %81 = vst [vmem:[#allocation2 + $0x10] sm:$0xff] 0.0
  $region13: #{custom_loss.1} parent=0 // pred_fallthru
    _
  %s82 = sadd.s32 0, 0
  %s83 = smul.u32 %s82, 24
  %s84 = ssub.s32 24, %s83
  %v85 = vld [vmem:[%s58] sm:$0xff]
  %v86 = vld [vmem:[%s58 + $0x8] sm:$0xff]
  %v87 = vld [vmem:[%s58 + $0x10] sm:$0xff]
  %v88 = vld [vmem:[%s70] sm:$0xff]
  %v89 = vld [vmem:[%s70 + $0x8] sm:$0xff]
  %v90 = vld [vmem:[%s70 + $0x10] sm:$0xff]
  %v91 = vsub.f32 %v85, %v88
  %v92 = vsub.f32 %v86, %v89
  %v93 = vsub.f32 %v87, %v90
  %v94 = vlaneseq
  %v95 = vshrl.u32 %v94, 7
  %v96 = vadd.s32 %v95, 8
  %v97 = vadd.s32 %v95, 16
  %v98 = vstv %s84
  %vm99 = vcmp.lt.s32.totalorder %v95, %v98
  %vm100 = vcmp.lt.s32.totalorder %v96, %v98
  %vm101 = vcmp.lt.s32.totalorder %v97, %v98
  %v102 = vsel %vm99, %v91, 0.0
  %v103 = vsel %vm100, %v92, 0.0
  %v104 = vsel %vm101, %v93, 0.0
  %v105 = vmul.f32 %v102, %v102
  %v106 = vmul.f32 %v103, %v103
  %v107 = vmul.f32 %v104, %v104
  %v108 = vld [vmem:[#allocation2] sm:$0xff]
  %v109 = vld [vmem:[#allocation2 + $0x8] sm:$0xff]
  %v110 = vld [vmem:[#allocation2 + $0x10] sm:$0xff]
  %v111 = vadd.f32 %v105, 0.0
  %v112 = vadd.f32 %v106, 0.0
  %v113 = vadd.f32 %v107, 0.0
  %v114 = vadd.f32 %v108, %v111
  %v115 = vadd.f32 %v109, %v112
  %v116 = vadd.f32 %v110, %v113
  %117 = vst [vmem:[#allocation2] sm:$0xff] %v114
  %118 = vst [vmem:[#allocation2 + $0x8] sm:$0xff] %v115
  %119 = vst [vmem:[#allocation2 + $0x10] sm:$0xff] %v116
  // Predicated region
  $region14: #{custom_loss.1} parent=0 // pred_check
    %p120 = pneg %p75
  $region15: #{custom_loss.1} parent=0 // pred_check_branch
    %122 = sbr.rel (%p120) target = $region17
  $region16: #{custom_loss.1} parent=0 // pred_region
    %v123 = vld [vmem:[#allocation2] sm:$0xff]
    %v124 = vld [vmem:[#allocation2 + $0x8] sm:$0xff]
    %v125 = vld [vmem:[#allocation2 + $0x10] sm:$0xff]
    %126 = vst [vmem:[%s2] sm:$0xff] %v123
    %127 = vst [vmem:[%s2 + $0x8] sm:$0xff] %v124
    %128 = vst [vmem:[%s2 + $0x10] sm:$0xff] %v125
  $region17: #{custom_loss.1} parent=0 // pred_fallthru
    _
  // Predicated region
  $region18: #{custom_loss.1} parent=0 // pred_check
    _
  $region19: #{custom_loss.1} parent=0 // pred_check_branch
    %130 = sbr.rel (0) target = $region21
  $region20: #{custom_loss.1} parent=0 // pred_region
    _
  $region21: #{custom_loss.1} parent=0 // pred_fallthru
    _
  // Predicated region
  $region22: #{custom_loss.1} parent=0 // pred_check
    _
  $region23: #{custom_loss.1} parent=0 // pred_check_branch
    %132 = sbr.rel (0) target = $region25
  $region24: #{custom_loss.1} parent=0 // pred_region
    _
  $region25: #{custom_loss.1} parent=0 // pred_fallthru
    _

</llo_original>
